<compile_context>
chip_gen: v5e
topology: v5e:2x2
jax: 0.10.0
libtpu: 0.0.40
codegen_flags: <defaults>
</compile_context>

<pallas_src>
import functools

import numpy as np
import jax
import jax.numpy as jnp
from jax.experimental import pallas as pl
from jax.experimental.pallas import tpu as pltpu

num_data = 2400
t_grid = np.linspace(0.0, 100, num_data)
y_signal = np.sin(t_grid) + np.sin(2 * t_grid)   # the `y` returned by forward()

_LANE = 128
_SUBLANE = 8
_T_BLK_MAX = 16                      # timesteps per grid step (unrolled in-kernel)
_HIGHEST = jax.lax.Precision.HIGHEST


def _round_up(x, m):
    return ((x + m - 1) // m) * m


# ----------------------------------------------------------------------------
# Fused recurrence kernel: one grid step = T_BLK timesteps of
#   h <- tanh(x_t @ U^T + h @ V^T)
# U^T, V^T, h0 are resident (constant index_map); hidden carried in VMEM
# scratch across grid steps and in registers within a block.
# ----------------------------------------------------------------------------
def _rnn_seq_kernel(x_ref, u_t_ref, v_t_ref, h0_ref, o_ref, h_scratch, *, t_blk):
    @pl.when(pl.program_id(0) == 0)
    def _():
        h_scratch[...] = h0_ref[...]

    u_t = u_t_ref[...]     # (D_pad, H_pad), resident for the whole grid
    v_t = v_t_ref[...]     # (H_pad, H_pad), resident for the whole grid

    def step(t, h):
        xu = jnp.dot(x_ref[t], u_t, precision=_HIGHEST,
                     preferred_element_type=jnp.float32)
        hv = jnp.dot(h, v_t, precision=_HIGHEST,
                     preferred_element_type=jnp.float32)
        h_new = jnp.tanh(xu + hv)           # f32 add (VPU) + tanh (EUP)
        o_ref[t] = h_new
        return h_new

    # Unrolled so loads/stores overlap the serial per-step MXU->EUP chain.
    h_final = jax.lax.fori_loop(0, t_blk, step, h_scratch[...], unroll=True)
    h_scratch[...] = h_final


def rnn_sequence(x_seq, u_t_pad, v_t_pad, hidden, hid_dim):
    """h_t = tanh(x_t @ U^T + h_{t-1} @ V^T) for t = 0..T-1, one pallas_call.

    x_seq:   (T, B, D_in) f32
    u_t_pad: (D_pad, H_pad) f32   U^T zero-padded (sublane / lane aligned)
    v_t_pad: (H_pad, H_pad) f32   V^T zero-padded
    hidden:  (B, hid_dim) f32     initial hidden state
    returns  (T, B, hid_dim) f32
    """
    T, B, D = x_seq.shape
    D_pad, H_pad = u_t_pad.shape
    B_pad = _round_up(max(B, 1), _SUBLANE)
    t_blk = min(_T_BLK_MAX, T)
    T_pad = _round_up(T, t_blk)

    # Zero-pad batch (sublane axis), input_dim (contracting axis) and time
    # (to a multiple of the time block).  Padded rows/cols stay exactly 0
    # through the recurrence (tanh(0)=0, zero weight rows) so slicing them off
    # is exact; padded trailing timesteps are simply dropped.
    x_p = jnp.zeros((T_pad, B_pad, D_pad), jnp.float32).at[:T, :B, :D].set(x_seq)
    h0_p = jnp.zeros((B_pad, H_pad), jnp.float32).at[:B, :hid_dim].set(hidden)

    kernel = functools.partial(_rnn_seq_kernel, t_blk=t_blk)

    h_seq_p = pl.pallas_call(
        kernel,
        out_shape=jax.ShapeDtypeStruct((T_pad, B_pad, H_pad), jnp.float32),
        grid=(T_pad // t_blk,),
        in_specs=[
            pl.BlockSpec((t_blk, B_pad, D_pad), lambda i: (i, 0, 0)),  # x block
            pl.BlockSpec((D_pad, H_pad), lambda i: (0, 0)),            # U^T resident
            pl.BlockSpec((H_pad, H_pad), lambda i: (0, 0)),            # V^T resident
            pl.BlockSpec((B_pad, H_pad), lambda i: (0, 0)),            # h0 resident
        ],
        out_specs=pl.BlockSpec((t_blk, B_pad, H_pad), lambda i: (i, 0, 0)),
        scratch_shapes=[pltpu.VMEM((B_pad, H_pad), jnp.float32)],  # hidden carry
        compiler_params=pltpu.CompilerParams(
            dimension_semantics=("arbitrary",)),   # time is a true recurrence
    )(x_p, u_t_pad, v_t_pad, h0_p)

    return h_seq_p[:T, :B, :hid_dim]


class RNN:
    """JAX mirror of the PyTorch RNN module (forward pass only)."""

    def __init__(self, input_dim, output_dim, hid_dim, batch_size, key):
        self.input_dim = input_dim
        self.output_dim = output_dim
        self.hid_dim = hid_dim
        self.batch_size = batch_size
        k_u, k_v, k_w = jax.random.split(key, 3)
        # nn.Linear-style uniform init: U(-1/sqrt(fan_in), 1/sqrt(fan_in))
        bu = 1.0 / np.sqrt(input_dim)
        bv = 1.0 / np.sqrt(hid_dim)
        self.u_weight = jax.random.uniform(
            k_u, (hid_dim, input_dim), jnp.float32, -bu, bu)
        self.v_weight = jax.random.uniform(
            k_v, (hid_dim, hid_dim), jnp.float32, -bv, bv)
        self.w_weight = jax.random.uniform(   # defined in __init__, unused in forward
            k_w, (output_dim, hid_dim), jnp.float32, -bv, bv)

        # Kernel-layout weights: transpose to (in_features, out_features) and
        # zero-pad to sublane/lane widths ONCE at init (not per step).
        self.h_pad = _round_up(hid_dim, _LANE)
        self.d_pad = _round_up(max(input_dim, 1), _SUBLANE)
        self.u_t_pad = (jnp.zeros((self.d_pad, self.h_pad), jnp.float32)
                        .at[:input_dim, :hid_dim].set(self.u_weight.T))
        self.v_t_pad = (jnp.zeros((self.h_pad, self.h_pad), jnp.float32)
                        .at[:hid_dim, :hid_dim].set(self.v_weight.T))

        self.hidden = self.init_hidden()

    def init_hidden(self, batch_size=None):
        if batch_size is None:
            batch_size = self.batch_size
        return jnp.zeros((batch_size, self.hid_dim), jnp.float32)

    def forward(self, x):
        # single step, exactly the PyTorch forward: h = tanh(u(x) + v(hidden))
        h_seq = rnn_sequence(x[None], self.u_t_pad, self.v_t_pad,
                             self.hidden, self.hid_dim)
        return (jnp.asarray(y_signal), h_seq[0])

    def forward_sequence(self, x_seq):
        # fused multi-step recurrence: one pallas_call over the whole sequence
        return rnn_sequence(x_seq, self.u_t_pad, self.v_t_pad,
                            self.hidden, self.hid_dim)


if __name__ == "__main__":
    batch_size, input_dim, hid_dim, output_dim = 2, 4, 32, 1
    seq_len, seq_len_long = 8, 24   # 24 exercises grid>1 plus time-padding

    key = jax.random.PRNGKey(0)
    k_x, k_h, k_xs, k_xl, k_params = jax.random.split(key, 5)

    model = RNN(input_dim, output_dim, hid_dim, batch_size, k_params)
    # give the recurrent state a non-trivial deterministic value
    model.hidden = jax.random.normal(k_h, (batch_size, hid_dim), jnp.float32)

    def ref_step(h, x_t):
        h_new = jnp.tanh(
            jnp.dot(x_t, model.u_weight.T, precision=_HIGHEST)
            + jnp.dot(h, model.v_weight.T, precision=_HIGHEST))
        return h_new, h_new

    # ---- single-step forward (original module semantics) ----
    x = jax.random.normal(k_x, (batch_size, input_dim), jnp.float32)
    y_out, h_out = model.forward(x)
    h_out = jax.block_until_ready(h_out)
    h_ref, _ = ref_step(model.hidden, x)
    np.testing.assert_allclose(np.asarray(h_out), np.asarray(h_ref),
                               rtol=1e-5, atol=1e-5)
    assert y_out.shape == (num_data,)

    # ---- fused multi-step recurrence, single time block ----
    x_seq = jax.random.normal(k_xs, (seq_len, batch_size, input_dim), jnp.float32)
    h_seq = jax.block_until_ready(model.forward_sequence(x_seq))
    _, h_seq_ref = jax.lax.scan(ref_step, model.hidden, x_seq)
    np.testing.assert_allclose(np.asarray(h_seq), np.asarray(h_seq_ref),
                               rtol=1e-5, atol=1e-5)

    # ---- fused multi-step recurrence, multiple time blocks + tail padding ----
    x_long = jax.random.normal(k_xl, (seq_len_long, batch_size, input_dim),
                               jnp.float32)
    h_long = jax.block_until_ready(model.forward_sequence(x_long))
    _, h_long_ref = jax.lax.scan(ref_step, model.hidden, x_long)
    np.testing.assert_allclose(np.asarray(h_long), np.asarray(h_long_ref),
                               rtol=1e-5, atol=1e-5)

    print("KERNEL_OK")
</pallas_src>

<mosaic_0001>
module attributes {stable_mosaic.version = 11 : i64} {
  func.func @_rnn_seq_kernel(%arg0: i32, %arg1: memref<1x8x8xf32, #tpu.memory_space<vmem>>, %arg2: memref<8x128xf32, #tpu.memory_space<vmem>>, %arg3: memref<128x128xf32, #tpu.memory_space<vmem>>, %arg4: memref<8x128xf32, #tpu.memory_space<vmem>>, %arg5: memref<1x8x128xf32, #tpu.memory_space<vmem>>, %arg6: memref<8x128xf32, #tpu.memory_space<vmem>>) attributes {dimension_semantics = [#tpu.dimension_semantics<arbitrary>], iteration_bounds = array<i64: 1>, scalar_prefetch = 0 : i64, scratch_operands = 1 : i64, tpu.core_type = #tpu.core_type<tc>, window_params = [{transform_indices = @transform_0, window_bounds = array<i64: 1, 8, 8>}, {pipeline_mode = #tpu.pipeline_mode<synchronous>, transform_indices = @transform_1, window_bounds = array<i64: 8, 128>}, {pipeline_mode = #tpu.pipeline_mode<synchronous>, transform_indices = @transform_2, window_bounds = array<i64: 128, 128>}, {pipeline_mode = #tpu.pipeline_mode<synchronous>, transform_indices = @transform_3, window_bounds = array<i64: 8, 128>}, {transform_indices = @transform_4, window_bounds = array<i64: 1, 8, 128>}]} {
    %c0_i32 = arith.constant 0 : i32
    %0 = arith.cmpi eq, %arg0, %c0_i32 : i32
    %1 = arith.extui %0 : i1 to i32
    %c0_i32_0 = arith.constant 0 : i32
    %2 = arith.cmpi ne, %1, %c0_i32_0 : i32
    scf.if %2 {
      %c0_14 = arith.constant 0 : index
      %c0_15 = arith.constant 0 : index
      %18 = vector.load %arg4[%c0_14, %c0_15] : memref<8x128xf32, #tpu.memory_space<vmem>>, vector<8x128xf32>
      %c0_16 = arith.constant 0 : index
      %c0_17 = arith.constant 0 : index
      %19 = vector.load %arg6[%c0_16, %c0_17] : memref<8x128xf32, #tpu.memory_space<vmem>>, vector<8x128xf32>
      tpu.vector_store %arg6[%c0_16, %c0_17], %18 {strides = array<i32>} : memref<8x128xf32, #tpu.memory_space<vmem>>, vector<8x128xf32>,
    } else {
    }
    %c0 = arith.constant 0 : index
    %c0_1 = arith.constant 0 : index
    %3 = vector.load %arg2[%c0, %c0_1] : memref<8x128xf32, #tpu.memory_space<vmem>>, vector<8x128xf32>
    %c0_2 = arith.constant 0 : index
    %c0_3 = arith.constant 0 : index
    %4 = vector.load %arg3[%c0_2, %c0_3] : memref<128x128xf32, #tpu.memory_space<vmem>>, vector<128x128xf32>
    %c0_4 = arith.constant 0 : index
    %c0_5 = arith.constant 0 : index
    %5 = vector.load %arg6[%c0_4, %c0_5] : memref<8x128xf32, #tpu.memory_space<vmem>>, vector<8x128xf32>
    %c0_i32_6 = arith.constant 0 : i32
    %6 = arith.index_cast %c0_i32_6 : i32 to index
    %c0_7 = arith.constant 0 : index
    %c0_8 = arith.constant 0 : index
    %7 = vector.load %arg1[%6, %c0_7, %c0_8] : memref<1x8x8xf32, #tpu.memory_space<vmem>>, vector<1x8x8xf32>
    %8 = vector.shape_cast %7 : vector<1x8x8xf32> to vector<8x8xf32>
    %cst = arith.constant dense<0.000000e+00> : vector<8x128xf32>
    %9 = tpu.matmul %8, %3, %cst {dimension_numbers = #tpu.dot_dimension_numbers<[1], [0], [0], [1], [0, 0, 1, 1], [], []>, precision = #tpu.contract_precision<fp32>} : vector<8x8xf32>, vector<8x128xf32>, vector<8x128xf32> -> vector<8x128xf32>
    %cst_9 = arith.constant dense<0.000000e+00> : vector<8x128xf32>
    %10 = tpu.matmul %5, %4, %cst_9 {dimension_numbers = #tpu.dot_dimension_numbers<[1], [0], [0], [1], [0, 0, 1, 1], [], []>, precision = #tpu.contract_precision<fp32>} : vector<8x128xf32>, vector<128x128xf32>, vector<8x128xf32> -> vector<8x128xf32>
    %11 = arith.addf %9, %10 : vector<8x128xf32>
    %12 = math.tanh %11 : vector<8x128xf32>
    %13 = arith.index_cast %c0_i32_6 : i32 to index
    %c0_10 = arith.constant 0 : index
    %c0_11 = arith.constant 0 : index
    %14 = vector.load %arg5[%13, %c0_10, %c0_11] : memref<1x8x128xf32, #tpu.memory_space<vmem>>, vector<1x8x128xf32>
    %15 = vector.shape_cast %14 : vector<1x8x128xf32> to vector<8x128xf32>
    %16 = vector.shape_cast %12 : vector<8x128xf32> to vector<1x8x128xf32>
    tpu.vector_store %arg5[%13, %c0_10, %c0_11], %16 {strides = array<i32>} : memref<1x8x128xf32, #tpu.memory_space<vmem>>, vector<1x8x128xf32>,
    %c1_i32 = arith.constant 1 : i32
    %c0_12 = arith.constant 0 : index
    %c0_13 = arith.constant 0 : index
    %17 = vector.load %arg6[%c0_12, %c0_13] : memref<8x128xf32, #tpu.memory_space<vmem>>, vector<8x128xf32>
    tpu.vector_store %arg6[%c0_12, %c0_13], %12 {strides = array<i32>} : memref<8x128xf32, #tpu.memory_space<vmem>>, vector<8x128xf32>,
    return
  }
  func.func @transform_0(%arg0: i32) -> (i32, i32, i32) {
    %c0_i32 = arith.constant 0 : i32
    %c0_i32_0 = arith.constant 0 : i32
    %c0_i32_1 = arith.constant 0 : i32
    return %arg0, %c0_i32, %c0_i32_0 : i32, i32, i32
  }
  func.func @transform_1(%arg0: i32) -> (i32, i32) {
    %c0_i32 = arith.constant 0 : i32
    %c0_i32_0 = arith.constant 0 : i32
    %c0_i32_1 = arith.constant 0 : i32
    return %c0_i32, %c0_i32_0 : i32, i32
  }
  func.func @transform_2(%arg0: i32) -> (i32, i32) {
    %c0_i32 = arith.constant 0 : i32
    %c0_i32_0 = arith.constant 0 : i32
    %c0_i32_1 = arith.constant 0 : i32
    return %c0_i32, %c0_i32_0 : i32, i32
  }
  func.func @transform_3(%arg0: i32) -> (i32, i32) {
    %c0_i32 = arith.constant 0 : i32
    %c0_i32_0 = arith.constant 0 : i32
    %c0_i32_1 = arith.constant 0 : i32
    return %c0_i32, %c0_i32_0 : i32, i32
  }
  func.func @transform_4(%arg0: i32) -> (i32, i32, i32) {
    %c0_i32 = arith.constant 0 : i32
    %c0_i32_0 = arith.constant 0 : i32
    %c0_i32_1 = arith.constant 0 : i32
    return %arg0, %c0_i32, %c0_i32_0 : i32, i32, i32
  }
}

</mosaic_0001>

<llo_original>
// kernel: tpu_custom_call.1
$region0: #{tpu_custom_call.1}
  #allocation0 [shape = 'u32[]', space=smem, size = 0x4, offset = 0x4, fixed_abs, tag = 'smem constant byte address 0x4 - core index']
  #allocation1 [shape = 'u32[72,128]{1,0:T(1,128)}', space=vmem, size = 0x9000, scoped, tag = 'internal scratch']
  #allocation2 [shape = 'f32[8,128]{1,0:T(8,128)}', space=vmem, size = 0x1000, scoped, tag = 'scratch operand']
  %s0 = inlined_call_operand.hbm [shape: f32[1,8,8], index: 0, kind: input, shape index: {}]
  %s1 = inlined_call_operand.hbm [shape: f32[8,128], index: 1, kind: input, shape index: {}]
  %s2 = inlined_call_operand.hbm [shape: f32[128,128], index: 2, kind: input, shape index: {}]
  %s3 = inlined_call_operand.hbm [shape: f32[8,128], index: 3, kind: input, shape index: {}]
  %s4 = inlined_call_operand.hbm [shape: f32[1,8,128], index: 4, kind: output, shape index: {}]
  %s5 = sld [smem:[#allocation0]]
  $region46: #{tpu_custom_call.1} parent=0
    _
  %s7 = ssub.s32 1, %s5
  %s8 = scalar_select 0, %s7, %s5
  $region1: #{tpu_custom_call.1} parent=0
    #allocation3 [shape = 'u8[4096]{0}', space=vmem, size = 0x1000, scoped, tag = 'input window, operand 0, single buffered']
    #allocation4 [shape = 's32[1]{0}', space=sflag, size = 0x4, scoped, tag = 'scoped memory for tpu_custom_call.1']
    #allocation5 [shape = 's32[1]{0}', space=sflag, size = 0x4, scoped, tag = 'scoped memory for tpu_custom_call.1']
    #allocation6 [shape = 'u8[4096]{0}', space=vmem, size = 0x1000, scoped, tag = 'input window, operand 1, single buffered']
    #allocation7 [shape = 's32[1]{0}', space=sflag, size = 0x4, scoped, tag = 'scoped memory for tpu_custom_call.1']
    #allocation8 [shape = 'u8[65536]{0}', space=vmem, size = 0x10000, scoped, tag = 'input window, operand 2, single buffered']
    #allocation9 [shape = 'u8[4096]{0}', space=vmem, size = 0x1000, scoped, tag = 'input window, operand 3, single buffered']
    #allocation10 [shape = 's32[1]{0}', space=sflag, size = 0x4, scoped, tag = 'scoped memory for tpu_custom_call.1']
    #allocation11 [shape = 'u8[4096]{0}', space=vmem, size = 0x1000, scoped, tag = 'output window, operand 0, single buffered']
    %9 = vsyncpa [#allocation4], 0
    %10 = vsyncpa [#allocation7], 0
    %11 = vsyncpa [#allocation10], 0
    %12 = vsyncpa [#allocation5], 0
    // Predicated region
    $region2: #{tpu_custom_call.1} parent=1 // pred_check
      _
    $region3: #{tpu_custom_call.1} parent=1 // pred_check_branch
      %14 = sbr.rel (0) target = $region5
    $region4: #{tpu_custom_call.1} parent=1 // pred_region
      %16 = vsyncadd [#allocation4], 0
      %s18 = sshll.u32 %s0, 4
      %s19 = int_to_ptr.hbm [resolvable:$true] %s18
      %s20 = sshll.u32 [#allocation3], 4
      %s21 = int_to_ptr.vmem [resolvable:$true] %s20
      %23 = dma.hbm_to_vmem [thread:$0]  %s19, 128, %s21, [#allocation4]
    $region5: #{tpu_custom_call.1} parent=1 // pred_fallthru
      _
    // Predicated region
    $region6: #{tpu_custom_call.1} parent=1 // pred_check
      _
    $region7: #{tpu_custom_call.1} parent=1 // pred_check_branch
      %25 = sbr.rel (0) target = $region9
    $region8: #{tpu_custom_call.1} parent=1 // pred_region
      %27 = vsyncadd [#allocation7], 0
      %s29 = sshll.u32 %s1, 4
      %s30 = int_to_ptr.hbm [resolvable:$true] %s29
      %s31 = sshll.u32 [#allocation6], 4
      %s32 = int_to_ptr.vmem [resolvable:$true] %s31
      %34 = dma.hbm_to_vmem [thread:$0]  %s30, 128, %s32, [#allocation7]
    $region9: #{tpu_custom_call.1} parent=1 // pred_fallthru
      _
    // Predicated region
    $region10: #{tpu_custom_call.1} parent=1 // pred_check
      _
    $region11: #{tpu_custom_call.1} parent=1 // pred_check_branch
      %36 = sbr.rel (0) target = $region13
    $region12: #{tpu_custom_call.1} parent=1 // pred_region
      %38 = vsyncadd [#allocation7], 0
      %s39 = sshll.u32 %s2, 4
      %s40 = int_to_ptr.hbm [resolvable:$true] %s39
      %s41 = sshll.u32 [#allocation8], 4
      %s42 = int_to_ptr.vmem [resolvable:$true] %s41
      %47 = dma.hbm_to_vmem [thread:$0]  %s40, 2048, %s42, [#allocation7], 128, 128, 8
    $region13: #{tpu_custom_call.1} parent=1 // pred_fallthru
      _
    // Predicated region
    $region14: #{tpu_custom_call.1} parent=1 // pred_check
      _
    $region15: #{tpu_custom_call.1} parent=1 // pred_check_branch
      %49 = sbr.rel (0) target = $region17
    $region16: #{tpu_custom_call.1} parent=1 // pred_region
      %51 = vsyncadd [#allocation10], 0
      %s53 = sshll.u32 %s3, 4
      %s54 = int_to_ptr.hbm [resolvable:$true] %s53
      %s55 = sshll.u32 [#allocation9], 4
      %s56 = int_to_ptr.vmem [resolvable:$true] %s55
      %58 = dma.hbm_to_vmem [thread:$0]  %s54, 128, %s56, [#allocation10]
    $region17: #{tpu_custom_call.1} parent=1 // pred_fallthru
      _
    // Predicated region
    $region18: #{tpu_custom_call.1} parent=1 // pred_check
      _
    $region19: #{tpu_custom_call.1} parent=1 // pred_check_branch
      %60 = sbr.rel (0) target = $region21
    $region20: #{tpu_custom_call.1} parent=1 // pred_region
      %62 = dma.done [#allocation4], 128
    $region21: #{tpu_custom_call.1} parent=1 // pred_fallthru
      _
    // Predicated region
    $region22: #{tpu_custom_call.1} parent=1 // pred_check
      _
    $region23: #{tpu_custom_call.1} parent=1 // pred_check_branch
      %64 = sbr.rel (0) target = $region25
    $region24: #{tpu_custom_call.1} parent=1 // pred_region
      %66 = dma.done [#allocation7], 128
    $region25: #{tpu_custom_call.1} parent=1 // pred_fallthru
      _
    // Predicated region
    $region26: #{tpu_custom_call.1} parent=1 // pred_check
      _
    $region27: #{tpu_custom_call.1} parent=1 // pred_check_branch
      %68 = sbr.rel (0) target = $region29
    $region28: #{tpu_custom_call.1} parent=1 // pred_region
      %70 = dma.done [#allocation7], 2048
    $region29: #{tpu_custom_call.1} parent=1 // pred_fallthru
      _
    // Predicated region
    $region30: #{tpu_custom_call.1} parent=1 // pred_check
      _
    $region31: #{tpu_custom_call.1} parent=1 // pred_check_branch
      %72 = sbr.rel (0) target = $region33
    $region32: #{tpu_custom_call.1} parent=1 // pred_region
      %74 = dma.done [#allocation10], 128
    $region33: #{tpu_custom_call.1} parent=1 // pred_fallthru
      _
    %p75 = scmp.eq.s32.totalorder 0, 0
    // Predicated region
    $region34: #{tpu_custom_call.1} parent=1 // pred_check
      %p76 = pneg %p75
    $region35: #{tpu_custom_call.1} parent=1 // pred_check_branch
      %78 = sbr.rel (%p76) target = $region37
    $region36: #{tpu_custom_call.1} parent=1 // pred_region
      %v79 = vld [vmem:[#allocation9] sm:$0xff]
      %80 = vst [vmem:[#allocation2] sm:$0xff] %v79
    $region37: #{tpu_custom_call.1} parent=1 // pred_fallthru
      _
    %v81 = vld [vmem:[#allocation6] sm:$0xff]
    %v82 = vld [vmem:[#allocation8] sm:$0xff]
    %v83 = vld [vmem:[#allocation8 + $0x8] sm:$0xff]
    %v84 = vld [vmem:[#allocation8 + $0x10] sm:$0xff]
    %v85 = vld [vmem:[#allocation8 + $0x18] sm:$0xff]
    %v86 = vld [vmem:[#allocation8 + $0x20] sm:$0xff]
    %v87 = vld [vmem:[#allocation8 + $0x28] sm:$0xff]
    %v88 = vld [vmem:[#allocation8 + $0x30] sm:$0xff]
    %v89 = vld [vmem:[#allocation8 + $0x38] sm:$0xff]
    %v90 = vld [vmem:[#allocation8 + $0x40] sm:$0xff]
    %v91 = vld [vmem:[#allocation8 + $0x48] sm:$0xff]
    %v92 = vld [vmem:[#allocation8 + $0x50] sm:$0xff]
    %v93 = vld [vmem:[#allocation8 + $0x58] sm:$0xff]
    %v94 = vld [vmem:[#allocation8 + $0x60] sm:$0xff]
    %v95 = vld [vmem:[#allocation8 + $0x68] sm:$0xff]
    %v96 = vld [vmem:[#allocation8 + $0x70] sm:$0xff]
    %v97 = vld [vmem:[#allocation8 + $0x78] sm:$0xff]
    %v98 = vld [vmem:[#allocation2] sm:$0xff]
    %v99 = vld [vmem:[#allocation3] sm:$0xff]
    %v100 = vand.u32 %v97, 4294901760
    %101 = vmatpush.msra.mxu0 %v100
    %v102 = vand.u32 %v96, 4294901760
    %103 = vmatpush.msra.mxu0 %v102
    %v104 = vand.u32 %v95, 4294901760
    %105 = vmatpush.msra.mxu0 %v104
    %v106 = vand.u32 %v94, 4294901760
    %107 = vmatpush.msra.mxu0 %v106
    %v108 = vand.u32 %v93, 4294901760
    %109 = vmatpush.msra.mxu0 %v108
    %v110 = vand.u32 %v92, 4294901760
    %111 = vmatpush.msra.mxu0 %v110
    %v112 = vand.u32 %v91, 4294901760
    %113 = vmatpush.msra.mxu0 %v112
    %v114 = vand.u32 %v90, 4294901760
    %115 = vmatpush.msra.mxu0 %v114
    %v116 = vand.u32 %v89, 4294901760
    %117 = vmatpush.msra.mxu0 %v116
    %v118 = vand.u32 %v88, 4294901760
    %119 = vmatpush.msra.mxu0 %v118
    %v120 = vand.u32 %v87, 4294901760
    %121 = vmatpush.msra.mxu0 %v120
    %v122 = vand.u32 %v86, 4294901760
    %123 = vmatpush.msra.mxu0 %v122
    %v124 = vand.u32 %v85, 4294901760
    %125 = vmatpush.msra.mxu0 %v124
    %v126 = vand.u32 %v84, 4294901760
    %127 = vmatpush.msra.mxu0 %v126
    %v128 = vand.u32 %v83, 4294901760
    %129 = vmatpush.msra.mxu0 %v128
    %v130 = vand.u32 %v82, 4294901760
    %131 = vmatpush.msra.mxu0 %v130
    %v132 = vand.u32 %v98, 4294901760
    %v133 = vsub.f32 %v98, %v132
    %v134 = vand.u32 %v133, 4294901760
    %v135 = vsub.f32 %v133, %v134
    %v136 = vand.u32 %v135, 4294901760
    %137 = vmatmul.f32.gmra.mxu0 %v136
    %v138 = vpop.f32.mrf.mxu0
    %v139 = vadd.f32 0.0, %v138
    %140 = vdwg.mxu0
    %v141 = vand.u32 %v97, 4294901760
    %v142 = vsub.f32 %v97, %v141
    %v143 = vand.u32 %v142, 4294901760
    %v144 = vsub.f32 %v142, %v143
    %v145 = vand.u32 %v144, 4294901760
    %146 = vmatpush.msra.mxu0 %v145
    %v147 = vand.u32 %v96, 4294901760
    %v148 = vsub.f32 %v96, %v147
    %v149 = vand.u32 %v148, 4294901760
    %v150 = vsub.f32 %v148, %v149
    %v151 = vand.u32 %v150, 4294901760
    %152 = vmatpush.msra.mxu0 %v151
    %v153 = vand.u32 %v95, 4294901760
    %v154 = vsub.f32 %v95, %v153
    %v155 = vand.u32 %v154, 4294901760
    %v156 = vsub.f32 %v154, %v155
    %v157 = vand.u32 %v156, 4294901760
    %158 = vmatpush.msra.mxu0 %v157
    %v159 = vand.u32 %v94, 4294901760
    %v160 = vsub.f32 %v94, %v159
    %v161 = vand.u32 %v160, 4294901760
    %v162 = vsub.f32 %v160, %v161
    %v163 = vand.u32 %v162, 4294901760
    %164 = vmatpush.msra.mxu0 %v163
    %v165 = vand.u32 %v93, 4294901760
    %v166 = vsub.f32 %v93, %v165
    %v167 = vand.u32 %v166, 4294901760
    %v168 = vsub.f32 %v166, %v167
    %v169 = vand.u32 %v168, 4294901760
    %170 = vmatpush.msra.mxu0 %v169
    %v171 = vand.u32 %v92, 4294901760
    %v172 = vsub.f32 %v92, %v171
    %v173 = vand.u32 %v172, 4294901760
    %v174 = vsub.f32 %v172, %v173
    %v175 = vand.u32 %v174, 4294901760
    %176 = vmatpush.msra.mxu0 %v175
    %v177 = vand.u32 %v91, 4294901760
    %v178 = vsub.f32 %v91, %v177
    %v179 = vand.u32 %v178, 4294901760
    %v180 = vsub.f32 %v178, %v179
    %v181 = vand.u32 %v180, 4294901760
    %182 = vmatpush.msra.mxu0 %v181
    %v183 = vand.u32 %v90, 4294901760
    %v184 = vsub.f32 %v90, %v183
    %v185 = vand.u32 %v184, 4294901760
    %v186 = vsub.f32 %v184, %v185
    %v187 = vand.u32 %v186, 4294901760
    %188 = vmatpush.msra.mxu0 %v187
    %v189 = vand.u32 %v89, 4294901760
    %v190 = vsub.f32 %v89, %v189
    %v191 = vand.u32 %v190, 4294901760
    %v192 = vsub.f32 %v190, %v191
    %v193 = vand.u32 %v192, 4294901760
    %194 = vmatpush.msra.mxu0 %v193
    %v195 = vand.u32 %v88, 4294901760
    %v196 = vsub.f32 %v88, %v195
    %v197 = vand.u32 %v196, 4294901760
    %v198 = vsub.f32 %v196, %v197
    %v199 = vand.u32 %v198, 4294901760
    %200 = vmatpush.msra.mxu0 %v199
    %v201 = vand.u32 %v87, 4294901760
    %v202 = vsub.f32 %v87, %v201
    %v203 = vand.u32 %v202, 4294901760
    %v204 = vsub.f32 %v202, %v203
    %v205 = vand.u32 %v204, 4294901760
    %206 = vmatpush.msra.mxu0 %v205
    %v207 = vand.u32 %v86, 4294901760
    %v208 = vsub.f32 %v86, %v207
    %v209 = vand.u32 %v208, 4294901760
    %v210 = vsub.f32 %v208, %v209
    %v211 = vand.u32 %v210, 4294901760
    %212 = vmatpush.msra.mxu0 %v211
    %v213 = vand.u32 %v85, 4294901760
    %v214 = vsub.f32 %v85, %v213
    %v215 = vand.u32 %v214, 4294901760
    %v216 = vsub.f32 %v214, %v215
    %v217 = vand.u32 %v216, 4294901760
    %218 = vmatpush.msra.mxu0 %v217
    %v219 = vand.u32 %v84, 4294901760
    %v220 = vsub.f32 %v84, %v219
    %v221 = vand.u32 %v220, 4294901760
    %v222 = vsub.f32 %v220, %v221
    %v223 = vand.u32 %v222, 4294901760
    %224 = vmatpush.msra.mxu0 %v223
    %v225 = vand.u32 %v83, 4294901760
    %v226 = vsub.f32 %v83, %v225
    %v227 = vand.u32 %v226, 4294901760
    %v228 = vsub.f32 %v226, %v227
    %v229 = vand.u32 %v228, 4294901760
    %230 = vmatpush.msra.mxu0 %v229
    %v231 = vand.u32 %v82, 4294901760
    %v232 = vsub.f32 %v82, %v231
    %v233 = vand.u32 %v232, 4294901760
    %v234 = vsub.f32 %v232, %v233
    %v235 = vand.u32 %v234, 4294901760
    %236 = vmatpush.msra.mxu0 %v235
    %v237 = vand.u32 %v98, 4294901760
    %238 = vmatmul.f32.gmra.mxu0 %v237
    %v239 = vpop.f32.mrf.mxu0
    %v240 = vadd.f32 %v139, %v239
    %241 = vdwg.mxu0
    %v242 = vand.u32 %v97, 4294901760
    %v243 = vsub.f32 %v97, %v242
    %244 = vmatpush.msra.mxu0 %v243
    %v245 = vand.u32 %v96, 4294901760
    %v246 = vsub.f32 %v96, %v245
    %247 = vmatpush.msra.mxu0 %v246
    %v248 = vand.u32 %v95, 4294901760
    %v249 = vsub.f32 %v95, %v248
    %250 = vmatpush.msra.mxu0 %v249
    %v251 = vand.u32 %v94, 4294901760
    %v252 = vsub.f32 %v94, %v251
    %253 = vmatpush.msra.mxu0 %v252
    %v254 = vand.u32 %v93, 4294901760
    %v255 = vsub.f32 %v93, %v254
    %256 = vmatpush.msra.mxu0 %v255
    %v257 = vand.u32 %v92, 4294901760
    %v258 = vsub.f32 %v92, %v257
    %259 = vmatpush.msra.mxu0 %v258
    %v260 = vand.u32 %v91, 4294901760
    %v261 = vsub.f32 %v91, %v260
    %262 = vmatpush.msra.mxu0 %v261
    %v263 = vand.u32 %v90, 4294901760
    %v264 = vsub.f32 %v90, %v263
    %265 = vmatpush.msra.mxu0 %v264
    %v266 = vand.u32 %v89, 4294901760
    %v267 = vsub.f32 %v89, %v266
    %268 = vmatpush.msra.mxu0 %v267
    %v269 = vand.u32 %v88, 4294901760
    %v270 = vsub.f32 %v88, %v269
    %271 = vmatpush.msra.mxu0 %v270
    %v272 = vand.u32 %v87, 4294901760
    %v273 = vsub.f32 %v87, %v272
    %274 = vmatpush.msra.mxu0 %v273
    %v275 = vand.u32 %v86, 4294901760
    %v276 = vsub.f32 %v86, %v275
    %277 = vmatpush.msra.mxu0 %v276
    %v278 = vand.u32 %v85, 4294901760
    %v279 = vsub.f32 %v85, %v278
    %280 = vmatpush.msra.mxu0 %v279
    %v281 = vand.u32 %v84, 4294901760
    %v282 = vsub.f32 %v84, %v281
    %283 = vmatpush.msra.mxu0 %v282
    %v284 = vand.u32 %v83, 4294901760
    %v285 = vsub.f32 %v83, %v284
    %286 = vmatpush.msra.mxu0 %v285
    %v287 = vand.u32 %v82, 4294901760
    %v288 = vsub.f32 %v82, %v287
    %289 = vmatpush.msra.mxu0 %v288
    %v290 = vand.u32 %v98, 4294901760
    %v291 = vsub.f32 %v98, %v290
    %292 = vmatmul.f32.gmra.mxu0 %v291
    %v293 = vpop.f32.mrf.mxu0
    %v294 = vadd.f32 %v240, %v293
    %295 = vdwg.mxu0
    %v296 = vand.u32 %v97, 4294901760
    %297 = vmatpush.msra.mxu0 %v296
    %v298 = vand.u32 %v96, 4294901760
    %299 = vmatpush.msra.mxu0 %v298
    %v300 = vand.u32 %v95, 4294901760
    %301 = vmatpush.msra.mxu0 %v300
    %v302 = vand.u32 %v94, 4294901760
    %303 = vmatpush.msra.mxu0 %v302
    %v304 = vand.u32 %v93, 4294901760
    %305 = vmatpush.msra.mxu0 %v304
    %v306 = vand.u32 %v92, 4294901760
    %307 = vmatpush.msra.mxu0 %v306
    %v308 = vand.u32 %v91, 4294901760
    %309 = vmatpush.msra.mxu0 %v308
    %v310 = vand.u32 %v90, 4294901760
    %311 = vmatpush.msra.mxu0 %v310
    %v312 = vand.u32 %v89, 4294901760
    %313 = vmatpush.msra.mxu0 %v312
    %v314 = vand.u32 %v88, 4294901760
    %315 = vmatpush.msra.mxu0 %v314
    %v316 = vand.u32 %v87, 4294901760
    %317 = vmatpush.msra.mxu0 %v316
    %v318 = vand.u32 %v86, 4294901760
    %319 = vmatpush.msra.mxu0 %v318
    %v320 = vand.u32 %v85, 4294901760
    %321 = vmatpush.msra.mxu0 %v320
    %v322 = vand.u32 %v84, 4294901760
    %323 = vmatpush.msra.mxu0 %v322
    %v324 = vand.u32 %v83, 4294901760
    %325 = vmatpush.msra.mxu0 %v324
    %v326 = vand.u32 %v82, 4294901760
    %327 = vmatpush.msra.mxu0 %v326
    %v328 = vand.u32 %v98, 4294901760
    %v329 = vsub.f32 %v98, %v328
    %v330 = vand.u32 %v329, 4294901760
    %331 = vmatmul.f32.gmra.mxu0 %v330
    %v332 = vpop.f32.mrf.mxu0
    %v333 = vadd.f32 %v294, %v332
    %334 = vdwg.mxu0
    %v335 = vand.u32 %v97, 4294901760
    %v336 = vsub.f32 %v97, %v335
    %v337 = vand.u32 %v336, 4294901760
    %338 = vmatpush.msra.mxu0 %v337
    %v339 = vand.u32 %v96, 4294901760
    %v340 = vsub.f32 %v96, %v339
    %v341 = vand.u32 %v340, 4294901760
    %342 = vmatpush.msra.mxu0 %v341
    %v343 = vand.u32 %v95, 4294901760
    %v344 = vsub.f32 %v95, %v343
    %v345 = vand.u32 %v344, 4294901760
    %346 = vmatpush.msra.mxu0 %v345
    %v347 = vand.u32 %v94, 4294901760
    %v348 = vsub.f32 %v94, %v347
    %v349 = vand.u32 %v348, 4294901760
    %350 = vmatpush.msra.mxu0 %v349
    %v351 = vand.u32 %v93, 4294901760
    %v352 = vsub.f32 %v93, %v351
    %v353 = vand.u32 %v352, 4294901760
    %354 = vmatpush.msra.mxu0 %v353
    %v355 = vand.u32 %v92, 4294901760
    %v356 = vsub.f32 %v92, %v355
    %v357 = vand.u32 %v356, 4294901760
    %358 = vmatpush.msra.mxu0 %v357
    %v359 = vand.u32 %v91, 4294901760
    %v360 = vsub.f32 %v91, %v359
    %v361 = vand.u32 %v360, 4294901760
    %362 = vmatpush.msra.mxu0 %v361
    %v363 = vand.u32 %v90, 4294901760
    %v364 = vsub.f32 %v90, %v363
    %v365 = vand.u32 %v364, 4294901760
    %366 = vmatpush.msra.mxu0 %v365
    %v367 = vand.u32 %v89, 4294901760
    %v368 = vsub.f32 %v89, %v367
    %v369 = vand.u32 %v368, 4294901760
    %370 = vmatpush.msra.mxu0 %v369
    %v371 = vand.u32 %v88, 4294901760
    %v372 = vsub.f32 %v88, %v371
    %v373 = vand.u32 %v372, 4294901760
    %374 = vmatpush.msra.mxu0 %v373
    %v375 = vand.u32 %v87, 4294901760
    %v376 = vsub.f32 %v87, %v375
    %v377 = vand.u32 %v376, 4294901760
    %378 = vmatpush.msra.mxu0 %v377
    %v379 = vand.u32 %v86, 4294901760
    %v380 = vsub.f32 %v86, %v379
    %v381 = vand.u32 %v380, 4294901760
    %382 = vmatpush.msra.mxu0 %v381
    %v383 = vand.u32 %v85, 4294901760
    %v384 = vsub.f32 %v85, %v383
    %v385 = vand.u32 %v384, 4294901760
    %386 = vmatpush.msra.mxu0 %v385
    %v387 = vand.u32 %v84, 4294901760
    %v388 = vsub.f32 %v84, %v387
    %v389 = vand.u32 %v388, 4294901760
    %390 = vmatpush.msra.mxu0 %v389
    %v391 = vand.u32 %v83, 4294901760
    %v392 = vsub.f32 %v83, %v391
    %v393 = vand.u32 %v392, 4294901760
    %394 = vmatpush.msra.mxu0 %v393
    %v395 = vand.u32 %v82, 4294901760
    %v396 = vsub.f32 %v82, %v395
    %v397 = vand.u32 %v396, 4294901760
    %398 = vmatpush.msra.mxu0 %v397
    %v399 = vand.u32 %v98, 4294901760
    %400 = vmatmul.f32.gmra.mxu0 %v399
    %v401 = vpop.f32.mrf.mxu0
    %v402 = vadd.f32 %v333, %v401
    %403 = vdwg.mxu0
    %v404 = vand.u32 %v97, 4294901760
    %405 = vmatpush.msra.mxu0 %v404
    %v406 = vand.u32 %v96, 4294901760
    %407 = vmatpush.msra.mxu0 %v406
    %v408 = vand.u32 %v95, 4294901760
    %409 = vmatpush.msra.mxu0 %v408
    %v410 = vand.u32 %v94, 4294901760
    %411 = vmatpush.msra.mxu0 %v410
    %v412 = vand.u32 %v93, 4294901760
    %413 = vmatpush.msra.mxu0 %v412
    %v414 = vand.u32 %v92, 4294901760
    %415 = vmatpush.msra.mxu0 %v414
    %v416 = vand.u32 %v91, 4294901760
    %417 = vmatpush.msra.mxu0 %v416
    %v418 = vand.u32 %v90, 4294901760
    %419 = vmatpush.msra.mxu0 %v418
    %v420 = vand.u32 %v89, 4294901760
    %421 = vmatpush.msra.mxu0 %v420
    %v422 = vand.u32 %v88, 4294901760
    %423 = vmatpush.msra.mxu0 %v422
    %v424 = vand.u32 %v87, 4294901760
    %425 = vmatpush.msra.mxu0 %v424
    %v426 = vand.u32 %v86, 4294901760
    %427 = vmatpush.msra.mxu0 %v426
    %v428 = vand.u32 %v85, 4294901760
    %429 = vmatpush.msra.mxu0 %v428
    %v430 = vand.u32 %v84, 4294901760
    %431 = vmatpush.msra.mxu0 %v430
    %v432 = vand.u32 %v83, 4294901760
    %433 = vmatpush.msra.mxu0 %v432
    %v434 = vand.u32 %v82, 4294901760
    %435 = vmatpush.msra.mxu0 %v434
    %v436 = vand.u32 %v98, 4294901760
    %437 = vmatmul.f32.gmra.mxu0 %v436
    %v438 = vpop.f32.mrf.mxu0
    %v439 = vadd.f32 %v402, %v438
    %440 = vdwg.mxu0
    %vm441 = vcmask 64512
    %v443 = vsel %vm441, %v99, 0
    %445 = vmatpush.msra.mxu0 0.0
    %446 = vmatpush.msra.mxu0 0.0
    %447 = vmatpush.msra.mxu0 0.0
    %448 = vmatpush.msra.mxu0 0.0
    %449 = vmatpush.msra.mxu0 0.0
    %450 = vmatpush.msra.mxu0 0.0
    %451 = vmatpush.msra.mxu0 0.0
    %452 = vmatpush.msra.mxu0 0.0
    %453 = vmatpush.msra.mxu0 0.0
    %454 = vmatpush.msra.mxu0 0.0
    %455 = vmatpush.msra.mxu0 0.0
    %456 = vmatpush.msra.mxu0 0.0
    %457 = vmatpush.msra.mxu0 0.0
    %458 = vmatpush.msra.mxu0 0.0
    %459 = vmatpush.msra.mxu0 0.0
    %v460 = vand.u32 %v81, 4294901760
    %461 = vmatpush.msra.mxu0 %v460
    %v462 = vand.u32 %v443, 4294901760
    %v463 = vsub.f32 %v443, %v462
    %v464 = vand.u32 %v463, 4294901760
    %v465 = vsub.f32 %v463, %v464
    %v466 = vand.u32 %v465, 4294901760
    %467 = vmatmul.f32.gmra.mxu0 %v466
    %v468 = vpop.f32.mrf.mxu0
    %v469 = vadd.f32 %v439, %v468
    %470 = vdwg.mxu0
    %471 = vmatpush.msra.mxu0 0.0
    %472 = vmatpush.msra.mxu0 0.0
    %473 = vmatpush.msra.mxu0 0.0
    %474 = vmatpush.msra.mxu0 0.0
    %475 = vmatpush.msra.mxu0 0.0
    %476 = vmatpush.msra.mxu0 0.0
    %477 = vmatpush.msra.mxu0 0.0
    %478 = vmatpush.msra.mxu0 0.0
    %479 = vmatpush.msra.mxu0 0.0
    %480 = vmatpush.msra.mxu0 0.0
    %481 = vmatpush.msra.mxu0 0.0
    %482 = vmatpush.msra.mxu0 0.0
    %483 = vmatpush.msra.mxu0 0.0
    %484 = vmatpush.msra.mxu0 0.0
    %485 = vmatpush.msra.mxu0 0.0
    %v486 = vand.u32 %v81, 4294901760
    %v487 = vsub.f32 %v81, %v486
    %v488 = vand.u32 %v487, 4294901760
    %v489 = vsub.f32 %v487, %v488
    %v490 = vand.u32 %v489, 4294901760
    %491 = vmatpush.msra.mxu0 %v490
    %v492 = vand.u32 %v443, 4294901760
    %493 = vmatmul.f32.gmra.mxu0 %v492
    %v494 = vpop.f32.mrf.mxu0
    %v495 = vadd.f32 %v469, %v494
    %496 = vdwg.mxu0
    %497 = vmatpush.msra.mxu0 0.0
    %498 = vmatpush.msra.mxu0 0.0
    %499 = vmatpush.msra.mxu0 0.0
    %500 = vmatpush.msra.mxu0 0.0
    %501 = vmatpush.msra.mxu0 0.0
    %502 = vmatpush.msra.mxu0 0.0
    %503 = vmatpush.msra.mxu0 0.0
    %504 = vmatpush.msra.mxu0 0.0
    %505 = vmatpush.msra.mxu0 0.0
    %506 = vmatpush.msra.mxu0 0.0
    %507 = vmatpush.msra.mxu0 0.0
    %508 = vmatpush.msra.mxu0 0.0
    %509 = vmatpush.msra.mxu0 0.0
    %510 = vmatpush.msra.mxu0 0.0
    %511 = vmatpush.msra.mxu0 0.0
    %v512 = vand.u32 %v81, 4294901760
    %v513 = vsub.f32 %v81, %v512
    %514 = vmatpush.msra.mxu0 %v513
    %v515 = vand.u32 %v443, 4294901760
    %v516 = vsub.f32 %v443, %v515
    %517 = vmatmul.f32.gmra.mxu0 %v516
    %v518 = vpop.f32.mrf.mxu0
    %v519 = vadd.f32 %v495, %v518
    %520 = vdwg.mxu0
    %521 = vmatpush.msra.mxu0 0.0
    %522 = vmatpush.msra.mxu0 0.0
    %523 = vmatpush.msra.mxu0 0.0
    %524 = vmatpush.msra.mxu0 0.0
    %525 = vmatpush.msra.mxu0 0.0
    %526 = vmatpush.msra.mxu0 0.0
    %527 = vmatpush.msra.mxu0 0.0
    %528 = vmatpush.msra.mxu0 0.0
    %529 = vmatpush.msra.mxu0 0.0
    %530 = vmatpush.msra.mxu0 0.0
    %531 = vmatpush.msra.mxu0 0.0
    %532 = vmatpush.msra.mxu0 0.0
    %533 = vmatpush.msra.mxu0 0.0
    %534 = vmatpush.msra.mxu0 0.0
    %535 = vmatpush.msra.mxu0 0.0
    %v536 = vand.u32 %v81, 4294901760
    %537 = vmatpush.msra.mxu0 %v536
    %v538 = vand.u32 %v443, 4294901760
    %v539 = vsub.f32 %v443, %v538
    %v540 = vand.u32 %v539, 4294901760
    %541 = vmatmul.f32.gmra.mxu0 %v540
    %v542 = vpop.f32.mrf.mxu0
    %v543 = vadd.f32 %v519, %v542
    %544 = vdwg.mxu0
    %545 = vmatpush.msra.mxu0 0.0
    %546 = vmatpush.msra.mxu0 0.0
    %547 = vmatpush.msra.mxu0 0.0
    %548 = vmatpush.msra.mxu0 0.0
    %549 = vmatpush.msra.mxu0 0.0
    %550 = vmatpush.msra.mxu0 0.0
    %551 = vmatpush.msra.mxu0 0.0
    %552 = vmatpush.msra.mxu0 0.0
    %553 = vmatpush.msra.mxu0 0.0
    %554 = vmatpush.msra.mxu0 0.0
    %555 = vmatpush.msra.mxu0 0.0
    %556 = vmatpush.msra.mxu0 0.0
    %557 = vmatpush.msra.mxu0 0.0
    %558 = vmatpush.msra.mxu0 0.0
    %559 = vmatpush.msra.mxu0 0.0
    %v560 = vand.u32 %v81, 4294901760
    %v561 = vsub.f32 %v81, %v560
    %v562 = vand.u32 %v561, 4294901760
    %563 = vmatpush.msra.mxu0 %v562
    %v564 = vand.u32 %v443, 4294901760
    %565 = vmatmul.f32.gmra.mxu0 %v564
    %v566 = vpop.f32.mrf.mxu0
    %v567 = vadd.f32 %v543, %v566
    %568 = vdwg.mxu0
    %569 = vmatpush.msra.mxu0 0.0
    %570 = vmatpush.msra.mxu0 0.0
    %571 = vmatpush.msra.mxu0 0.0
    %572 = vmatpush.msra.mxu0 0.0
    %573 = vmatpush.msra.mxu0 0.0
    %574 = vmatpush.msra.mxu0 0.0
    %575 = vmatpush.msra.mxu0 0.0
    %576 = vmatpush.msra.mxu0 0.0
    %577 = vmatpush.msra.mxu0 0.0
    %578 = vmatpush.msra.mxu0 0.0
    %579 = vmatpush.msra.mxu0 0.0
    %580 = vmatpush.msra.mxu0 0.0
    %581 = vmatpush.msra.mxu0 0.0
    %582 = vmatpush.msra.mxu0 0.0
    %583 = vmatpush.msra.mxu0 0.0
    %v584 = vand.u32 %v81, 4294901760
    %585 = vmatpush.msra.mxu0 %v584
    %v586 = vand.u32 %v443, 4294901760
    %587 = vmatmul.f32.gmra.mxu0 %v586
    %v588 = vpop.f32.mrf.mxu0
    %v589 = vadd.f32 %v567, %v588
    %590 = vdwg.mxu0
    %v591 = vtanh.pop %v589
    %592 = vst [vmem:[#allocation11] sm:$0xff] %v591
    %593 = vst [vmem:[#allocation2] sm:$0xff] %v591
    // Predicated region
    $region38: #{tpu_custom_call.1} parent=1 // pred_check
      _
    $region39: #{tpu_custom_call.1} parent=1 // pred_check_branch
      %595 = sbr.rel (0) target = $region41
    $region40: #{tpu_custom_call.1} parent=1 // pred_region
      %597 = vsyncadd [#allocation5], 0
      %s599 = sshll.u32 [#allocation11], 4
      %s600 = int_to_ptr.vmem [resolvable:$true] %s599
      %s601 = sshll.u32 %s4, 4
      %s602 = int_to_ptr.hbm [resolvable:$true] %s601
      %604 = dma.vmem_to_hbm [thread:$0]  %s600, 128, %s602, [#allocation5]
    $region41: #{tpu_custom_call.1} parent=1 // pred_fallthru
      _
    // Predicated region
    $region42: #{tpu_custom_call.1} parent=1 // pred_check
      _
    $region43: #{tpu_custom_call.1} parent=1 // pred_check_branch
      %606 = sbr.rel (0) target = $region45
    $region44: #{tpu_custom_call.1} parent=1 // pred_region
      %608 = dma.done [#allocation5], 128
    $region45: #{tpu_custom_call.1} parent=1 // pred_fallthru
      _
    %609 = vsyncpa [#allocation4], 1
    %610 = vsyncpa [#allocation7], 1
    %611 = vsyncpa [#allocation10], 1
    %612 = vsyncpa [#allocation5], 1

</llo_original>
